<compile_context>
chip_gen: v5e
topology: v5e:2x2
jax: 0.10.0
libtpu: 0.0.40
codegen_flags: <defaults>
</compile_context>

<pallas_src>
import functools

import jax
import jax.numpy as jnp
from jax import lax
from jax.experimental import pallas as pl
from jax.experimental.pallas import tpu as pltpu

_TWO_PI = 6.283185307179586


def _srl(x, n):
    """Logical right shift for int32: arithmetic shift + mask of the kept bits."""
    return (x >> n) & ((1 << (32 - n)) - 1)


def _mix(x):
    """lowbias32-style 32-bit integer finalizer (good avalanche, VPU-only ops)."""
    x = x ^ _srl(x, 16)
    x = x * jnp.int32(0x7FEB352D)
    x = x ^ _srl(x, 15)
    x = x * jnp.int32(-2066379125)  # 0x846CA68B as int32 (wrapped)
    x = x ^ _srl(x, 16)
    return x


def gaussian_noise_kernel(seed_ref, wav_ref, out_ref, *, mean, std):
    r_tile, c = wav_ref.shape
    ch = c // 2  # one 32-bit random word feeds two output elements

    # Globally-unique per-element counter over the half tile.
    row = lax.broadcasted_iota(jnp.int32, (r_tile, ch), 0)
    col = lax.broadcasted_iota(jnp.int32, (r_tile, ch), 1)
    counter = (pl.program_id(0) * r_tile + row) * ch + col

    # Mix the base seed with a golden-ratio odd constant, then hash twice.
    seed = seed_ref[0] * jnp.int32(-1640531527)  # 0x9E3779B9 as int32 (wrapped)
    bits = _mix(_mix(counter ^ seed))

    # 16-bit uniform split: low half -> u1 in (0, 1], high half -> u2 in [0, 1).
    u1 = ((bits & 0xFFFF).astype(jnp.float32) + 1.0) * jnp.float32(1.0 / 65536.0)
    u2 = _srl(bits, 16).astype(jnp.float32) * jnp.float32(1.0 / 65536.0)

    # Box-Muller; use BOTH outputs to fill the two lane-halves of the tile.
    r = jnp.sqrt(jnp.float32(-2.0) * jnp.log(u1))
    theta = jnp.float32(_TWO_PI) * u2
    z0 = r * jnp.cos(theta)
    z1 = r * jnp.sin(theta)

    mean_f = jnp.float32(mean)
    std_f = jnp.float32(std)

    lo = wav_ref[:, :ch].astype(jnp.float32) + (mean_f + std_f * z0)
    hi = wav_ref[:, ch:].astype(jnp.float32) + (mean_f + std_f * z1)
    out_ref[:, :ch] = jnp.clip(lo, -1.0, 1.0).astype(out_ref.dtype)
    out_ref[:, ch:] = jnp.clip(hi, -1.0, 1.0).astype(out_ref.dtype)


def gaussian_noise(wav, seed, *, mean=0.0, std=0.05):
    """wav + N(mean, std) noise, clamped to [-1, 1]. Works for any wav shape."""
    orig_shape = wav.shape
    total = wav.size

    # Flatten to a lane/sublane-dense 2-D view; pad to a multiple of 8*256 so
    # R % 8 == 0 and C % 256 == 0 are always achievable (pad is sliced off).
    flat = wav.reshape(-1)
    pad = (-total) % (8 * 256)
    if pad:
        flat = jnp.pad(flat, (0, pad))
    padded = flat.size

    ncol = 256
    for cand in (4096, 2048, 1024, 512, 256):
        if padded % cand == 0 and (padded // cand) % 8 == 0:
            ncol = cand
            break
    nrow = padded // ncol

    # Row tile: multiple of 8, divides nrow, block <= ~2 MiB so the
    # double-buffered in+out footprint stays well under scoped VMEM on
    # v5e (16 MiB default), v6e and v7x.
    r_tile = 8
    for cand in (512, 256, 128, 64, 32, 16, 8):
        if nrow % cand == 0 and cand * ncol * 4 <= (2 << 20):
            r_tile = cand
            break

    x2d = flat.reshape(nrow, ncol)
    seed_arr = jnp.asarray([seed], dtype=jnp.int32)
    kernel = functools.partial(gaussian_noise_kernel, mean=float(mean), std=float(std))

    out2d = pl.pallas_call(
        kernel,
        out_shape=jax.ShapeDtypeStruct((nrow, ncol), wav.dtype),
        grid_spec=pltpu.PrefetchScalarGridSpec(
            num_scalar_prefetch=1,
            grid=(nrow // r_tile,),
            in_specs=[pl.BlockSpec((r_tile, ncol), lambda i, seed_ref: (i, 0))],
            out_specs=pl.BlockSpec((r_tile, ncol), lambda i, seed_ref: (i, 0)),
        ),
        compiler_params=pltpu.CompilerParams(
            dimension_semantics=("parallel",),       # v7x: use both TensorCores
            vmem_limit_bytes=32 * 1024 * 1024,
        ),
    )(seed_arr, x2d)

    out = out2d.reshape(-1)
    if pad:
        out = out[:total]
    return out.reshape(orig_shape)


if __name__ == "__main__":
    key = jax.random.PRNGKey(0)
    B, T = 2, 2048  # small waveform batch: 2 clips of 2048 samples
    wav = jax.random.uniform(key, (B, T), dtype=jnp.float32, minval=-1.0, maxval=1.0)

    out = jax.block_until_ready(gaussian_noise(wav, seed=1234, mean=0.0, std=0.05))

    # sanity: shape/dtype preserved, values clamped, noise magnitude plausible
    assert out.shape == wav.shape and out.dtype == wav.dtype
    assert bool(jnp.all(out <= 1.0)) and bool(jnp.all(out >= -1.0))

    delta = out - wav
    max_dev = float(jnp.max(jnp.abs(delta)))
    assert max_dev < 0.5, f"noise magnitude implausible: {max_dev}"

    # Away from the clamp boundary the added noise should look like N(0, 0.05).
    interior = jnp.abs(wav) < 0.7
    n = jnp.maximum(jnp.sum(interior), 1).astype(jnp.float32)
    mean_n = jnp.sum(jnp.where(interior, delta, 0.0)) / n
    var_n = jnp.sum(jnp.where(interior, (delta - mean_n) ** 2, 0.0)) / n
    std_n = float(jnp.sqrt(var_n))
    assert abs(float(mean_n)) < 0.01, f"noise mean off: {float(mean_n)}"
    assert 0.035 < std_n < 0.065, f"noise std off: {std_n}"

    print("KERNEL_OK")
</pallas_src>

<mosaic_0001>
module attributes {stable_mosaic.version = 11 : i64} {
  func.func @gaussian_noise_kernel(%arg0: i32, %arg1: memref<1xi32, #tpu.memory_space<smem>>, %arg2: memref<8x512xf32, #tpu.memory_space<vmem>>, %arg3: memref<8x512xf32, #tpu.memory_space<vmem>>) attributes {dimension_semantics = [#tpu.dimension_semantics<parallel>], iteration_bounds = array<i64: 1>, scalar_prefetch = 1 : i64, scratch_operands = 0 : i64, tpu.core_type = #tpu.core_type<tc>, window_params = [{transform_indices = @transform_0, window_bounds = array<i64: 8, 512>}, {transform_indices = @transform_1, window_bounds = array<i64: 8, 512>}]} {
    %0 = tpu.iota {dimensions = array<i32: 0>} : vector<8x256xi32>
    %1 = tpu.iota {dimensions = array<i32: 1>} : vector<8x256xi32>
    %c8_i32 = arith.constant 8 : i32
    %2 = arith.muli %arg0, %c8_i32 : i32
    %3 = vector.broadcast %2 : i32 to vector<8x256xi32>
    %4 = arith.addi %3, %0 : vector<8x256xi32>
    %c256_i32 = arith.constant 256 : i32
    %5 = vector.broadcast %c256_i32 : i32 to vector<8x256xi32>
    %6 = arith.muli %4, %5 : vector<8x256xi32>
    %7 = arith.addi %6, %1 : vector<8x256xi32>
    %c0 = arith.constant 0 : index
    %8 = memref.load %arg1[%c0] : memref<1xi32, #tpu.memory_space<smem>>
    %c-1640531527_i32 = arith.constant -1640531527 : i32
    %9 = arith.muli %8, %c-1640531527_i32 : i32
    %10 = vector.broadcast %9 : i32 to vector<8x256xi32>
    %11 = arith.xori %7, %10 : vector<8x256xi32>
    %c16_i32 = arith.constant 16 : i32
    %12 = vector.broadcast %c16_i32 : i32 to vector<8x256xi32>
    %13 = arith.shrsi %11, %12 : vector<8x256xi32>
    %c65535_i32 = arith.constant 65535 : i32
    %14 = vector.broadcast %c65535_i32 : i32 to vector<8x256xi32>
    %15 = arith.andi %13, %14 : vector<8x256xi32>
    %16 = arith.xori %11, %15 : vector<8x256xi32>
    %c2146121005_i32 = arith.constant 2146121005 : i32
    %17 = vector.broadcast %c2146121005_i32 : i32 to vector<8x256xi32>
    %18 = arith.muli %16, %17 : vector<8x256xi32>
    %c15_i32 = arith.constant 15 : i32
    %19 = vector.broadcast %c15_i32 : i32 to vector<8x256xi32>
    %20 = arith.shrsi %18, %19 : vector<8x256xi32>
    %c131071_i32 = arith.constant 131071 : i32
    %21 = vector.broadcast %c131071_i32 : i32 to vector<8x256xi32>
    %22 = arith.andi %20, %21 : vector<8x256xi32>
    %23 = arith.xori %18, %22 : vector<8x256xi32>
    %c-2066379125_i32 = arith.constant -2066379125 : i32
    %24 = vector.broadcast %c-2066379125_i32 : i32 to vector<8x256xi32>
    %25 = arith.muli %23, %24 : vector<8x256xi32>
    %c16_i32_0 = arith.constant 16 : i32
    %26 = vector.broadcast %c16_i32_0 : i32 to vector<8x256xi32>
    %27 = arith.shrsi %25, %26 : vector<8x256xi32>
    %c65535_i32_1 = arith.constant 65535 : i32
    %28 = vector.broadcast %c65535_i32_1 : i32 to vector<8x256xi32>
    %29 = arith.andi %27, %28 : vector<8x256xi32>
    %30 = arith.xori %25, %29 : vector<8x256xi32>
    %c16_i32_2 = arith.constant 16 : i32
    %31 = vector.broadcast %c16_i32_2 : i32 to vector<8x256xi32>
    %32 = arith.shrsi %30, %31 : vector<8x256xi32>
    %c65535_i32_3 = arith.constant 65535 : i32
    %33 = vector.broadcast %c65535_i32_3 : i32 to vector<8x256xi32>
    %34 = arith.andi %32, %33 : vector<8x256xi32>
    %35 = arith.xori %30, %34 : vector<8x256xi32>
    %c2146121005_i32_4 = arith.constant 2146121005 : i32
    %36 = vector.broadcast %c2146121005_i32_4 : i32 to vector<8x256xi32>
    %37 = arith.muli %35, %36 : vector<8x256xi32>
    %c15_i32_5 = arith.constant 15 : i32
    %38 = vector.broadcast %c15_i32_5 : i32 to vector<8x256xi32>
    %39 = arith.shrsi %37, %38 : vector<8x256xi32>
    %c131071_i32_6 = arith.constant 131071 : i32
    %40 = vector.broadcast %c131071_i32_6 : i32 to vector<8x256xi32>
    %41 = arith.andi %39, %40 : vector<8x256xi32>
    %42 = arith.xori %37, %41 : vector<8x256xi32>
    %c-2066379125_i32_7 = arith.constant -2066379125 : i32
    %43 = vector.broadcast %c-2066379125_i32_7 : i32 to vector<8x256xi32>
    %44 = arith.muli %42, %43 : vector<8x256xi32>
    %c16_i32_8 = arith.constant 16 : i32
    %45 = vector.broadcast %c16_i32_8 : i32 to vector<8x256xi32>
    %46 = arith.shrsi %44, %45 : vector<8x256xi32>
    %c65535_i32_9 = arith.constant 65535 : i32
    %47 = vector.broadcast %c65535_i32_9 : i32 to vector<8x256xi32>
    %48 = arith.andi %46, %47 : vector<8x256xi32>
    %49 = arith.xori %44, %48 : vector<8x256xi32>
    %c65535_i32_10 = arith.constant 65535 : i32
    %50 = vector.broadcast %c65535_i32_10 : i32 to vector<8x256xi32>
    %51 = arith.andi %49, %50 : vector<8x256xi32>
    %52 = arith.sitofp %51 : vector<8x256xi32> to vector<8x256xf32>
    %cst = arith.constant 1.000000e+00 : f32
    %53 = vector.broadcast %cst : f32 to vector<8x256xf32>
    %54 = arith.addf %52, %53 : vector<8x256xf32>
    %cst_11 = arith.constant 1.52587891E-5 : f32
    %55 = vector.broadcast %cst_11 : f32 to vector<8x256xf32>
    %56 = arith.mulf %54, %55 : vector<8x256xf32>
    %c16_i32_12 = arith.constant 16 : i32
    %57 = vector.broadcast %c16_i32_12 : i32 to vector<8x256xi32>
    %58 = arith.shrsi %49, %57 : vector<8x256xi32>
    %c65535_i32_13 = arith.constant 65535 : i32
    %59 = vector.broadcast %c65535_i32_13 : i32 to vector<8x256xi32>
    %60 = arith.andi %58, %59 : vector<8x256xi32>
    %61 = arith.sitofp %60 : vector<8x256xi32> to vector<8x256xf32>
    %cst_14 = arith.constant 1.52587891E-5 : f32
    %62 = vector.broadcast %cst_14 : f32 to vector<8x256xf32>
    %63 = arith.mulf %61, %62 : vector<8x256xf32>
    %64 = math.log %56 : vector<8x256xf32>
    %cst_15 = arith.constant -2.000000e+00 : f32
    %65 = vector.broadcast %cst_15 : f32 to vector<8x256xf32>
    %66 = arith.mulf %65, %64 : vector<8x256xf32>
    %67 = math.sqrt %66 : vector<8x256xf32>
    %cst_16 = arith.constant 6.28318548 : f32
    %68 = vector.broadcast %cst_16 : f32 to vector<8x256xf32>
    %69 = arith.mulf %68, %63 : vector<8x256xf32>
    %70 = math.cos %69 : vector<8x256xf32>
    %71 = arith.mulf %67, %70 : vector<8x256xf32>
    %72 = math.sin %69 : vector<8x256xf32>
    %73 = arith.mulf %67, %72 : vector<8x256xf32>
    %c0_17 = arith.constant 0 : index
    %c0_18 = arith.constant 0 : index
    %74 = vector.load %arg2[%c0_17, %c0_18] : memref<8x512xf32, #tpu.memory_space<vmem>>, vector<8x256xf32>
    %cst_19 = arith.constant 5.000000e-02 : f32
    %75 = vector.broadcast %cst_19 : f32 to vector<8x256xf32>
    %76 = arith.mulf %75, %71 : vector<8x256xf32>
    %cst_20 = arith.constant 0.000000e+00 : f32
    %77 = vector.broadcast %cst_20 : f32 to vector<8x256xf32>
    %78 = arith.addf %77, %76 : vector<8x256xf32>
    %79 = arith.addf %74, %78 : vector<8x256xf32>
    %c0_21 = arith.constant 0 : index
    %c256 = arith.constant 256 : index
    %80 = vector.load %arg2[%c0_21, %c256] : memref<8x512xf32, #tpu.memory_space<vmem>>, vector<8x256xf32>
    %cst_22 = arith.constant 5.000000e-02 : f32
    %81 = vector.broadcast %cst_22 : f32 to vector<8x256xf32>
    %82 = arith.mulf %81, %73 : vector<8x256xf32>
    %cst_23 = arith.constant 0.000000e+00 : f32
    %83 = vector.broadcast %cst_23 : f32 to vector<8x256xf32>
    %84 = arith.addf %83, %82 : vector<8x256xf32>
    %85 = arith.addf %80, %84 : vector<8x256xf32>
    %cst_24 = arith.constant -1.000000e+00 : f32
    %cst_25 = arith.constant 1.000000e+00 : f32
    %86 = vector.broadcast %cst_24 : f32 to vector<8x256xf32>
    %87 = arith.maximumf %86, %79 : vector<8x256xf32>
    %88 = vector.broadcast %cst_25 : f32 to vector<8x256xf32>
    %89 = arith.minimumf %88, %87 : vector<8x256xf32>
    %c0_26 = arith.constant 0 : index
    %c0_27 = arith.constant 0 : index
    %90 = vector.load %arg3[%c0_26, %c0_27] : memref<8x512xf32, #tpu.memory_space<vmem>>, vector<8x256xf32>
    tpu.vector_store %arg3[%c0_26, %c0_27], %89 {strides = array<i32>} : memref<8x512xf32, #tpu.memory_space<vmem>>, vector<8x256xf32>,
    %cst_28 = arith.constant -1.000000e+00 : f32
    %cst_29 = arith.constant 1.000000e+00 : f32
    %91 = vector.broadcast %cst_28 : f32 to vector<8x256xf32>
    %92 = arith.maximumf %91, %85 : vector<8x256xf32>
    %93 = vector.broadcast %cst_29 : f32 to vector<8x256xf32>
    %94 = arith.minimumf %93, %92 : vector<8x256xf32>
    %c0_30 = arith.constant 0 : index
    %c256_31 = arith.constant 256 : index
    %95 = vector.load %arg3[%c0_30, %c256_31] : memref<8x512xf32, #tpu.memory_space<vmem>>, vector<8x256xf32>
    tpu.vector_store %arg3[%c0_30, %c256_31], %94 {strides = array<i32>} : memref<8x512xf32, #tpu.memory_space<vmem>>, vector<8x256xf32>,
    return
  }
  func.func @transform_0(%arg0: i32, %arg1: memref<1xi32, #tpu.memory_space<smem>>) -> (i32, i32) {
    %c0_i32 = arith.constant 0 : i32
    %c0_i32_0 = arith.constant 0 : i32
    return %arg0, %c0_i32 : i32, i32
  }
  func.func @transform_1(%arg0: i32, %arg1: memref<1xi32, #tpu.memory_space<smem>>) -> (i32, i32) {
    %c0_i32 = arith.constant 0 : i32
    %c0_i32_0 = arith.constant 0 : i32
    return %arg0, %c0_i32 : i32, i32
  }
}

</mosaic_0001>

<llo_original>
// kernel: tpu_custom_call.1
$region0: #{tpu_custom_call.1}
  #allocation0 [shape = 'u32[]', space=smem, size = 0x4, offset = 0x4, fixed_abs, tag = 'smem constant byte address 0x4 - core index']
  #allocation1 [shape = 'u32[72,128]{1,0:T(1,128)}', space=vmem, size = 0x9000, scoped, tag = 'internal scratch']
  #allocation2 [shape = 's32[1]{0}', space=sflag, size = 0x4, scoped, tag = 'scoped memory for tpu_custom_call.1']
  #allocation3 [shape = 's32[1]{0:T(128)S(6)}', space=smem, size = 0x200, scoped, tag = 'prefetched SMEM operand 0']
  %s0 = inlined_call_operand.<no memory space> [shape: s32[1], index: 0, kind: input, shape index: {}]
  %s1 = inlined_call_operand.hbm [shape: f32[8,512], index: 1, kind: input, shape index: {}]
  %s2 = inlined_call_operand.hbm [shape: f32[8,512], index: 2, kind: output, shape index: {}]
  %s3 = sld [smem:[#allocation0]]
  $region18: #{tpu_custom_call.1} parent=0
    _
  %s5 = ssub.s32 1, %s3
  %s6 = scalar_select 0, %s5, %s3
  %7 = sst [smem:[#allocation3]] %s0
  $region1: #{tpu_custom_call.1} parent=0
    #allocation4 [shape = 'u8[16384]{0}', space=vmem, size = 0x4000, scoped, tag = 'input window, operand 1, single buffered']
    #allocation5 [shape = 's32[1]{0}', space=sflag, size = 0x4, scoped, tag = 'scoped memory for tpu_custom_call.1']
    #allocation6 [shape = 's32[1]{0}', space=sflag, size = 0x4, scoped, tag = 'scoped memory for tpu_custom_call.1']
    #allocation7 [shape = 'u8[16384]{0}', space=vmem, size = 0x4000, scoped, tag = 'output window, operand 0, single buffered']
    %8 = vsyncpa [#allocation5], 0
    %9 = vsyncpa [#allocation6], 0
    // Predicated region
    $region2: #{tpu_custom_call.1} parent=1 // pred_check
      _
    $region3: #{tpu_custom_call.1} parent=1 // pred_check_branch
      %11 = sbr.rel (0) target = $region5
    $region4: #{tpu_custom_call.1} parent=1 // pred_region
      %13 = vsyncadd [#allocation5], 0
      %s15 = sshll.u32 %s1, 4
      %s16 = int_to_ptr.hbm [resolvable:$true] %s15
      %s17 = sshll.u32 [#allocation4], 4
      %s18 = int_to_ptr.vmem [resolvable:$true] %s17
      %20 = dma.hbm_to_vmem [thread:$0]  %s16, 512, %s18, [#allocation5]
    $region5: #{tpu_custom_call.1} parent=1 // pred_fallthru
      _
    // Predicated region
    $region6: #{tpu_custom_call.1} parent=1 // pred_check
      _
    $region7: #{tpu_custom_call.1} parent=1 // pred_check_branch
      %22 = sbr.rel (0) target = $region9
    $region8: #{tpu_custom_call.1} parent=1 // pred_region
      %24 = dma.done [#allocation5], 512
    $region9: #{tpu_custom_call.1} parent=1 // pred_fallthru
      _
    %v25 = vlaneseq
    %v26 = vshrl.u32 %v25, 7
    %v27 = vlaneseq
    %v28 = vand.u32 %v27, 127
    %v29 = vadd.s32 %v28, 128
    %s30 = smul.u32 0, 8
    %v31 = vstv %s30
    %v32 = vadd.s32 %v31, %v26
    %v33 = vmul.u32 %v32, 256
    %v34 = vadd.s32 %v33, %v28
    %v35 = vadd.s32 %v33, %v29
    %s36 = sld [smem:[#allocation3]]
    %s37 = smul.u32 %s36, 2654435769
    %v38 = vstv %s37
    %v39 = vxor.u32 %v34, %v38
    %v40 = vxor.u32 %v35, %v38
    %v41 = vshra.s32 %v39, 16
    %v42 = vshra.s32 %v40, 16
    %v43 = vand.u32 %v41, 65535
    %v44 = vand.u32 %v42, 65535
    %v45 = vxor.u32 %v39, %v43
    %v46 = vxor.u32 %v40, %v44
    %v47 = vmul.u32 %v45, 2146121005
    %v48 = vmul.u32 %v46, 2146121005
    %v49 = vshra.s32 %v47, 15
    %v50 = vshra.s32 %v48, 15
    %v51 = vand.u32 %v49, 131071
    %v52 = vand.u32 %v50, 131071
    %v53 = vxor.u32 %v47, %v51
    %v54 = vxor.u32 %v48, %v52
    %v55 = vmul.u32 %v53, 2228588171
    %v56 = vmul.u32 %v54, 2228588171
    %v57 = vshra.s32 %v55, 16
    %v58 = vshra.s32 %v56, 16
    %v59 = vand.u32 %v57, 65535
    %v60 = vand.u32 %v58, 65535
    %v61 = vxor.u32 %v55, %v59
    %v62 = vxor.u32 %v56, %v60
    %v63 = vshra.s32 %v61, 16
    %v64 = vshra.s32 %v62, 16
    %v65 = vand.u32 %v63, 65535
    %v66 = vand.u32 %v64, 65535
    %v67 = vxor.u32 %v61, %v65
    %v68 = vxor.u32 %v62, %v66
    %v69 = vmul.u32 %v67, 2146121005
    %v70 = vmul.u32 %v68, 2146121005
    %v71 = vshra.s32 %v69, 15
    %v72 = vshra.s32 %v70, 15
    %v73 = vand.u32 %v71, 131071
    %v74 = vand.u32 %v72, 131071
    %v75 = vxor.u32 %v69, %v73
    %v76 = vxor.u32 %v70, %v74
    %v77 = vmul.u32 %v75, 2228588171
    %v78 = vmul.u32 %v76, 2228588171
    %v79 = vshra.s32 %v77, 16
    %v80 = vshra.s32 %v78, 16
    %v81 = vand.u32 %v79, 65535
    %v82 = vand.u32 %v80, 65535
    %v83 = vxor.u32 %v77, %v81
    %v84 = vxor.u32 %v78, %v82
    %v85 = vand.u32 %v83, 65535
    %v86 = vand.u32 %v84, 65535
    %v87 = vcvt.s32.f32 %v85
    %v88 = vcvt.s32.f32 %v86
    %v89 = vadd.f32 %v87, 1.0
    %v90 = vadd.f32 %v88, 1.0
    %v91 = vmul.f32 %v89, 1.5258789e-05
    %v92 = vmul.f32 %v90, 1.5258789e-05
    %v93 = vshra.s32 %v83, 16
    %v94 = vshra.s32 %v84, 16
    %v95 = vand.u32 %v93, 65535
    %v96 = vand.u32 %v94, 65535
    %v97 = vcvt.s32.f32 %v95
    %v98 = vcvt.s32.f32 %v96
    %v99 = vmul.f32 %v97, 1.5258789e-05
    %v100 = vmul.f32 %v98, 1.5258789e-05
    %v101 = vlog2.pop %v91
    %v102 = vmul.f32 %v101, 0.6931472
    %v103 = vlog2.pop %v92
    %v104 = vmul.f32 %v103, 0.6931472
    %v105 = vmul.f32 %v102, -2.0
    %v106 = vmul.f32 %v104, -2.0
    %v107 = vrsqrt.pop %v105
    %v108 = vmul.f32 %v107, %v105
    %v109 = vmul.f32 %v108, %v107
    %v110 = vmul.f32 0.5, %v109
    %v111 = vsub.f32 1.5, %v110
    %v112 = vmul.f32 %v107, %v111
    %v113 = vmul.f32 %v105, %v112
    %vm114 = vcmp.eq.f32.partialorder %v105, inf
    %v115 = vsel %vm114, %v105, %v113
    %vm116 = vcmp.eq.f32.partialorder %v105, 0.0
    %v117 = vand.u32 %v105, 2147483648
    %v118 = vsel %vm116, %v117, %v115
    %v119 = vrsqrt.pop %v106
    %v120 = vmul.f32 %v119, %v106
    %v121 = vmul.f32 %v120, %v119
    %v122 = vmul.f32 0.5, %v121
    %v123 = vsub.f32 1.5, %v122
    %v124 = vmul.f32 %v119, %v123
    %v125 = vmul.f32 %v106, %v124
    %vm126 = vcmp.eq.f32.partialorder %v106, inf
    %v127 = vsel %vm126, %v106, %v125
    %vm128 = vcmp.eq.f32.partialorder %v106, 0.0
    %v129 = vand.u32 %v106, 2147483648
    %v130 = vsel %vm128, %v129, %v127
    %v131 = vmul.f32 %v99, 6.2831855
    %v132 = vmul.f32 %v100, 6.2831855
    %v133 = vand.u32 2147483647, %v131
    %vm134 = vcmp.le.f32.partialorder %v133, 0.7853982
    %vm135 = vcmp.lt.s32.totalorder %v131, 0
    %v136 = vand.u32 %v131, 2139095040
    %v137 = vshrl.u32 %v136, 23
    %v138 = vsub.s32 %v137, 127
    %v139 = vand.u32 2147483647, %v131
    %v140 = vand.u32 %v139, 8388607
    %v141 = vor.u32 %v140, 8388608
    %v142 = vsub.s32 0, %v141
    %v143 = vadd.s32 %v138, 1
    %vm144 = vcmp.gt.s32.totalorder %v143, 0
    %v145 = vsel %vm144, %v143, 0
    %v146 = vshrl.u32 %v145, 5
    %v147 = vand.u32 %v145, 31
    %v148 = vsub.s32 32, %v147
    %v149 = vshrl.u32 683565275, %v148
    %v150 = vshll.u32 683565275, %v147
    %v151 = vshrl.u32 2475754826, %v148
    %v152 = vor.u32 %v150, %v151
    %v153 = vshll.u32 2475754826, %v147
    %v154 = vshrl.u32 2131351028, %v148
    %v155 = vor.u32 %v153, %v154
    %v156 = vshll.u32 2131351028, %v147
    %v157 = vshrl.u32 2102212464, %v148
    %v158 = vor.u32 %v156, %v157
    %v159 = vshll.u32 2102212464, %v147
    %v160 = vshrl.u32 920167782, %v148
    %v161 = vor.u32 %v159, %v160
    %v162 = vshll.u32 920167782, %v147
    %v163 = vshrl.u32 1326507024, %v148
    %v164 = vor.u32 %v162, %v163
    %vm165 = vcmp.lt.s32.totalorder %v146, 1
    %vm166 = vcmp.lt.s32.totalorder %v146, 2
    %vm167 = vcmp.lt.s32.totalorder %v146, 3
    %vm168 = vcmp.lt.s32.totalorder %v146, 4
    %v169 = vsel %vm165, %v149, %v152
    %v170 = vsel %vm168, %v158, 2102212464
    %v171 = vsel %vm167, %v155, %v170
    %v172 = vsel %vm166, %v169, %v171
    %v173 = vsel %vm165, %v152, %v155
    %v174 = vsel %vm168, %v161, 920167782
    %v175 = vsel %vm167, %v158, %v174
    %v176 = vsel %vm166, %v173, %v175
    %v177 = vsel %vm165, %v155, %v158
    %v178 = vsel %vm168, %v164, 1326507024
    %v179 = vsel %vm167, %v161, %v178
    %v180 = vsel %vm166, %v177, %v179
    %v181 = vshll.u32 %v141, 8
    %v182 = vand.u32 %v181, 65535
    %v183 = vshrl.u32 %v181, 16
    %v184 = vand.u32 %v180, 65535
    %v185 = vshrl.u32 %v180, 16
    %v186 = vmul.u32 %v182, %v184
    %v187 = vmul.u32 %v182, %v185
    %v188 = vmul.u32 %v183, %v184
    %v189 = vmul.u32 %v183, %v185
    %v190 = vshll.u32 %v187, 16
    %v191 = vshrl.u32 %v187, 16
    %v192 = vshll.u32 %v188, 16
    %v193 = vshrl.u32 %v188, 16
    %vm194 = vc.u32 %v186, %v190
    %v195 = vsel %vm194, 1, 0
    %v196 = vadd.s32 %v186, %v190
    %v197 = vadd.s32 %v189, %v195
    %vm198 = vc.u32 %v196, %v192
    %v199 = vsel %vm198, 1, 0
    %v200 = vadd.s32 %v196, %v192
    %v201 = vadd.s32 %v197, %v199
    %v202 = vadd.s32 %v201, %v191
    %v203 = vadd.s32 %v202, %v193
    %v204 = vand.u32 %v181, 65535
    %v205 = vshrl.u32 %v181, 16
    %v206 = vand.u32 %v176, 65535
    %v207 = vshrl.u32 %v176, 16
    %v208 = vmul.u32 %v204, %v206
    %v209 = vmul.u32 %v204, %v207
    %v210 = vmul.u32 %v205, %v206
    %v211 = vmul.u32 %v205, %v207
    %v212 = vshll.u32 %v209, 16
    %v213 = vshrl.u32 %v209, 16
    %v214 = vshll.u32 %v210, 16
    %v215 = vshrl.u32 %v210, 16
    %vm216 = vc.u32 %v208, %v212
    %v217 = vsel %vm216, 1, 0
    %v218 = vadd.s32 %v208, %v212
    %v219 = vadd.s32 %v211, %v217
    %vm220 = vc.u32 %v218, %v214
    %v221 = vsel %vm220, 1, 0
    %v222 = vadd.s32 %v218, %v214
    %v223 = vadd.s32 %v219, %v221
    %v224 = vadd.s32 %v223, %v213
    %v225 = vadd.s32 %v224, %v215
    %v226 = vmul.u32 %v181, %v172
    %v227 = vadd.s32 %v203, %v222
    %vm228 = vc.u32 %v203, %v222
    %v229 = vadd.s32 %v225, 1
    %v230 = vsel %vm228, %v229, %v225
    %v231 = vadd.s32 %v226, %v230
    %v232 = vadd.s32 %v231, 536870912
    %v233 = vshrl.u32 %v232, 30
    %v234 = vshll.u32 %v233, 30
    %v235 = vsub.s32 %v231, %v234
    %vm236 = vcmp.lt.s32.totalorder %v235, 0
    %v237 = vsub.s32 0, %v235
    %v238 = vsel %vm236, %v237, %v235
    %v239 = vclz %v238
    %v240 = vsub.s32 %v239, 2
    %vm241 = vcmp.gt.s32.totalorder 0, %v240
    %v242 = vsel %vm241, 0, %v240
    %v243 = vsub.s32 32, %v242
    %v244 = vshll.u32 %v235, %v242
    %v245 = vshrl.u32 %v227, %v243
    %v246 = vor.u32 %v244, %v245
    %v247 = vsub.s32 4294967266, %v242
    %v248 = vadd.s32 %v247, 127
    %v249 = vshll.u32 %v248, 23
    %v250 = vor.u32 4788187, %v249
    %v251 = vand.u32 2147483647, %v250
    %v253 = vcvt.s32.f32 %v246
    %v254 = vmul.f32 %v253, %v251
    %v255 = vxor.u32 %v254, 2147483648
    %v256 = vsel %vm135, %v255, %v254
    %v257 = vsub.s32 4, %v233
    %v258 = vsel %vm135, %v257, %v233
    %v259 = vsel %vm134, %v131, %v256
    %v260 = vsel %vm134, 0, %v258
    %v261 = vmul.f32 %v259, %v259
    %v262 = vmul.f32 %v261, -0.001358992
    %v263 = vadd.f32 %v262, 0.041655596
    %v264 = vmul.f32 %v261, %v263
    %v265 = vadd.f32 %v264, -0.4999988
    %v266 = vmul.f32 %v261, %v265
    %v267 = vadd.f32 1.0, %v266
    %v268 = vmul.f32 %v259, %v259
    %v269 = vmul.f32 %v268, -0.00019511016
    %v270 = vadd.f32 %v269, 0.008332121
    %v271 = vmul.f32 %v268, %v270
    %v272 = vadd.f32 %v271, -0.16666654
    %v273 = vmul.f32 %v268, %v272
    %v274 = vadd.f32 %v273, 1.0
    %v275 = vmul.f32 %v274, %v259
    %vm276 = vweird.f32 %v131
    %v277 = vand.u32 %v260, 3
    %vm278 = vcmp.lt.s32.totalorder %v277, 2
    %vm279 = vcmp.eq.s32.totalorder %v277, 0
    %v280 = vxor.u32 %v275, 2147483648
    %v281 = vsel %vm279, %v267, %v280
    %vm282 = vcmp.eq.s32.totalorder %v277, 2
    %v283 = vxor.u32 %v267, 2147483648
    %v284 = vsel %vm282, %v283, %v275
    %v285 = vsel %vm278, %v281, %v284
    %v286 = vsel %vm276, nan, %v285
    %v287 = vand.u32 2147483647, %v132
    %vm288 = vcmp.le.f32.partialorder %v287, 0.7853982
    %vm289 = vcmp.lt.s32.totalorder %v132, 0
    %v290 = vand.u32 %v132, 2139095040
    %v291 = vshrl.u32 %v290, 23
    %v292 = vsub.s32 %v291, 127
    %v293 = vand.u32 2147483647, %v132
    %v294 = vand.u32 %v293, 8388607
    %v295 = vor.u32 %v294, 8388608
    %v296 = vsub.s32 0, %v295
    %v297 = vadd.s32 %v292, 1
    %vm298 = vcmp.gt.s32.totalorder %v297, 0
    %v299 = vsel %vm298, %v297, 0
    %v300 = vshrl.u32 %v299, 5
    %v301 = vand.u32 %v299, 31
    %v302 = vsub.s32 32, %v301
    %v303 = vshrl.u32 683565275, %v302
    %v304 = vshll.u32 683565275, %v301
    %v305 = vshrl.u32 2475754826, %v302
    %v306 = vor.u32 %v304, %v305
    %v307 = vshll.u32 2475754826, %v301
    %v308 = vshrl.u32 2131351028, %v302
    %v309 = vor.u32 %v307, %v308
    %v310 = vshll.u32 2131351028, %v301
    %v311 = vshrl.u32 2102212464, %v302
    %v312 = vor.u32 %v310, %v311
    %v313 = vshll.u32 2102212464, %v301
    %v314 = vshrl.u32 920167782, %v302
    %v315 = vor.u32 %v313, %v314
    %v316 = vshll.u32 920167782, %v301
    %v317 = vshrl.u32 1326507024, %v302
    %v318 = vor.u32 %v316, %v317
    %vm319 = vcmp.lt.s32.totalorder %v300, 1
    %vm320 = vcmp.lt.s32.totalorder %v300, 2
    %vm321 = vcmp.lt.s32.totalorder %v300, 3
    %vm322 = vcmp.lt.s32.totalorder %v300, 4
    %v323 = vsel %vm319, %v303, %v306
    %v324 = vsel %vm322, %v312, 2102212464
    %v325 = vsel %vm321, %v309, %v324
    %v326 = vsel %vm320, %v323, %v325
    %v327 = vsel %vm319, %v306, %v309
    %v328 = vsel %vm322, %v315, 920167782
    %v329 = vsel %vm321, %v312, %v328
    %v330 = vsel %vm320, %v327, %v329
    %v331 = vsel %vm319, %v309, %v312
    %v332 = vsel %vm322, %v318, 1326507024
    %v333 = vsel %vm321, %v315, %v332
    %v334 = vsel %vm320, %v331, %v333
    %v335 = vshll.u32 %v295, 8
    %v336 = vand.u32 %v335, 65535
    %v337 = vshrl.u32 %v335, 16
    %v338 = vand.u32 %v334, 65535
    %v339 = vshrl.u32 %v334, 16
    %v340 = vmul.u32 %v336, %v338
    %v341 = vmul.u32 %v336, %v339
    %v342 = vmul.u32 %v337, %v338
    %v343 = vmul.u32 %v337, %v339
    %v344 = vshll.u32 %v341, 16
    %v345 = vshrl.u32 %v341, 16
    %v346 = vshll.u32 %v342, 16
    %v347 = vshrl.u32 %v342, 16
    %vm348 = vc.u32 %v340, %v344
    %v349 = vsel %vm348, 1, 0
    %v350 = vadd.s32 %v340, %v344
    %v351 = vadd.s32 %v343, %v349
    %vm352 = vc.u32 %v350, %v346
    %v353 = vsel %vm352, 1, 0
    %v354 = vadd.s32 %v350, %v346
    %v355 = vadd.s32 %v351, %v353
    %v356 = vadd.s32 %v355, %v345
    %v357 = vadd.s32 %v356, %v347
    %v358 = vand.u32 %v335, 65535
    %v359 = vshrl.u32 %v335, 16
    %v360 = vand.u32 %v330, 65535
    %v361 = vshrl.u32 %v330, 16
    %v362 = vmul.u32 %v358, %v360
    %v363 = vmul.u32 %v358, %v361
    %v364 = vmul.u32 %v359, %v360
    %v365 = vmul.u32 %v359, %v361
    %v366 = vshll.u32 %v363, 16
    %v367 = vshrl.u32 %v363, 16
    %v368 = vshll.u32 %v364, 16
    %v369 = vshrl.u32 %v364, 16
    %vm370 = vc.u32 %v362, %v366
    %v371 = vsel %vm370, 1, 0
    %v372 = vadd.s32 %v362, %v366
    %v373 = vadd.s32 %v365, %v371
    %vm374 = vc.u32 %v372, %v368
    %v375 = vsel %vm374, 1, 0
    %v376 = vadd.s32 %v372, %v368
    %v377 = vadd.s32 %v373, %v375
    %v378 = vadd.s32 %v377, %v367
    %v379 = vadd.s32 %v378, %v369
    %v380 = vmul.u32 %v335, %v326
    %v381 = vadd.s32 %v357, %v376
    %vm382 = vc.u32 %v357, %v376
    %v383 = vadd.s32 %v379, 1
    %v384 = vsel %vm382, %v383, %v379
    %v385 = vadd.s32 %v380, %v384
    %v386 = vadd.s32 %v385, 536870912
    %v387 = vshrl.u32 %v386, 30
    %v388 = vshll.u32 %v387, 30
    %v389 = vsub.s32 %v385, %v388
    %vm390 = vcmp.lt.s32.totalorder %v389, 0
    %v391 = vsub.s32 0, %v389
    %v392 = vsel %vm390, %v391, %v389
    %v393 = vclz %v392
    %v394 = vsub.s32 %v393, 2
    %vm395 = vcmp.gt.s32.totalorder 0, %v394
    %v396 = vsel %vm395, 0, %v394
    %v397 = vsub.s32 32, %v396
    %v398 = vshll.u32 %v389, %v396
    %v399 = vshrl.u32 %v381, %v397
    %v400 = vor.u32 %v398, %v399
    %v401 = vsub.s32 4294967266, %v396
    %v402 = vadd.s32 %v401, 127
    %v403 = vshll.u32 %v402, 23
    %v404 = vor.u32 4788187, %v403
    %v405 = vand.u32 2147483647, %v404
    %v407 = vcvt.s32.f32 %v400
    %v408 = vmul.f32 %v407, %v405
    %v409 = vxor.u32 %v408, 2147483648
    %v410 = vsel %vm289, %v409, %v408
    %v411 = vsub.s32 4, %v387
    %v412 = vsel %vm289, %v411, %v387
    %v413 = vsel %vm288, %v132, %v410
    %v414 = vsel %vm288, 0, %v412
    %v415 = vmul.f32 %v413, %v413
    %v416 = vmul.f32 %v415, -0.001358992
    %v417 = vadd.f32 %v416, 0.041655596
    %v418 = vmul.f32 %v415, %v417
    %v419 = vadd.f32 %v418, -0.4999988
    %v420 = vmul.f32 %v415, %v419
    %v421 = vadd.f32 1.0, %v420
    %v422 = vmul.f32 %v413, %v413
    %v423 = vmul.f32 %v422, -0.00019511016
    %v424 = vadd.f32 %v423, 0.008332121
    %v425 = vmul.f32 %v422, %v424
    %v426 = vadd.f32 %v425, -0.16666654
    %v427 = vmul.f32 %v422, %v426
    %v428 = vadd.f32 %v427, 1.0
    %v429 = vmul.f32 %v428, %v413
    %vm430 = vweird.f32 %v132
    %v431 = vand.u32 %v414, 3
    %vm432 = vcmp.lt.s32.totalorder %v431, 2
    %vm433 = vcmp.eq.s32.totalorder %v431, 0
    %v434 = vxor.u32 %v429, 2147483648
    %v435 = vsel %vm433, %v421, %v434
    %vm436 = vcmp.eq.s32.totalorder %v431, 2
    %v437 = vxor.u32 %v421, 2147483648
    %v438 = vsel %vm436, %v437, %v429
    %v439 = vsel %vm432, %v435, %v438
    %v440 = vsel %vm430, nan, %v439
    %v441 = vmul.f32 %v118, %v286
    %v442 = vmul.f32 %v130, %v440
    %v443 = vand.u32 2147483647, %v131
    %vm444 = vcmp.le.f32.partialorder %v443, 0.7853982
    %vm445 = vcmp.lt.s32.totalorder %v131, 0
    %v446 = vand.u32 %v131, 2139095040
    %v447 = vshrl.u32 %v446, 23
    %v448 = vsub.s32 %v447, 127
    %v449 = vand.u32 2147483647, %v131
    %v450 = vand.u32 %v449, 8388607
    %v451 = vor.u32 %v450, 8388608
    %v452 = vsub.s32 0, %v451
    %v453 = vadd.s32 %v448, 1
    %vm454 = vcmp.gt.s32.totalorder %v453, 0
    %v455 = vsel %vm454, %v453, 0
    %v456 = vshrl.u32 %v455, 5
    %v457 = vand.u32 %v455, 31
    %v458 = vsub.s32 32, %v457
    %v459 = vshrl.u32 683565275, %v458
    %v460 = vshll.u32 683565275, %v457
    %v461 = vshrl.u32 2475754826, %v458
    %v462 = vor.u32 %v460, %v461
    %v463 = vshll.u32 2475754826, %v457
    %v464 = vshrl.u32 2131351028, %v458
    %v465 = vor.u32 %v463, %v464
    %v466 = vshll.u32 2131351028, %v457
    %v467 = vshrl.u32 2102212464, %v458
    %v468 = vor.u32 %v466, %v467
    %v469 = vshll.u32 2102212464, %v457
    %v470 = vshrl.u32 920167782, %v458
    %v471 = vor.u32 %v469, %v470
    %v472 = vshll.u32 920167782, %v457
    %v473 = vshrl.u32 1326507024, %v458
    %v474 = vor.u32 %v472, %v473
    %vm475 = vcmp.lt.s32.totalorder %v456, 1
    %vm476 = vcmp.lt.s32.totalorder %v456, 2
    %vm477 = vcmp.lt.s32.totalorder %v456, 3
    %vm478 = vcmp.lt.s32.totalorder %v456, 4
    %v479 = vsel %vm475, %v459, %v462
    %v480 = vsel %vm478, %v468, 2102212464
    %v481 = vsel %vm477, %v465, %v480
    %v482 = vsel %vm476, %v479, %v481
    %v483 = vsel %vm475, %v462, %v465
    %v484 = vsel %vm478, %v471, 920167782
    %v485 = vsel %vm477, %v468, %v484
    %v486 = vsel %vm476, %v483, %v485
    %v487 = vsel %vm475, %v465, %v468
    %v488 = vsel %vm478, %v474, 1326507024
    %v489 = vsel %vm477, %v471, %v488
    %v490 = vsel %vm476, %v487, %v489
    %v491 = vshll.u32 %v451, 8
    %v492 = vand.u32 %v491, 65535
    %v493 = vshrl.u32 %v491, 16
    %v494 = vand.u32 %v490, 65535
    %v495 = vshrl.u32 %v490, 16
    %v496 = vmul.u32 %v492, %v494
    %v497 = vmul.u32 %v492, %v495
    %v498 = vmul.u32 %v493, %v494
    %v499 = vmul.u32 %v493, %v495
    %v500 = vshll.u32 %v497, 16
    %v501 = vshrl.u32 %v497, 16
    %v502 = vshll.u32 %v498, 16
    %v503 = vshrl.u32 %v498, 16
    %vm504 = vc.u32 %v496, %v500
    %v505 = vsel %vm504, 1, 0
    %v506 = vadd.s32 %v496, %v500
    %v507 = vadd.s32 %v499, %v505
    %vm508 = vc.u32 %v506, %v502
    %v509 = vsel %vm508, 1, 0
    %v510 = vadd.s32 %v506, %v502
    %v511 = vadd.s32 %v507, %v509
    %v512 = vadd.s32 %v511, %v501
    %v513 = vadd.s32 %v512, %v503
    %v514 = vand.u32 %v491, 65535
    %v515 = vshrl.u32 %v491, 16
    %v516 = vand.u32 %v486, 65535
    %v517 = vshrl.u32 %v486, 16
    %v518 = vmul.u32 %v514, %v516
    %v519 = vmul.u32 %v514, %v517
    %v520 = vmul.u32 %v515, %v516
    %v521 = vmul.u32 %v515, %v517
    %v522 = vshll.u32 %v519, 16
    %v523 = vshrl.u32 %v519, 16
    %v524 = vshll.u32 %v520, 16
    %v525 = vshrl.u32 %v520, 16
    %vm526 = vc.u32 %v518, %v522
    %v527 = vsel %vm526, 1, 0
    %v528 = vadd.s32 %v518, %v522
    %v529 = vadd.s32 %v521, %v527
    %vm530 = vc.u32 %v528, %v524
    %v531 = vsel %vm530, 1, 0
    %v532 = vadd.s32 %v528, %v524
    %v533 = vadd.s32 %v529, %v531
    %v534 = vadd.s32 %v533, %v523
    %v535 = vadd.s32 %v534, %v525
    %v536 = vmul.u32 %v491, %v482
    %v537 = vadd.s32 %v513, %v532
    %vm538 = vc.u32 %v513, %v532
    %v539 = vadd.s32 %v535, 1
    %v540 = vsel %vm538, %v539, %v535
    %v541 = vadd.s32 %v536, %v540
    %v542 = vadd.s32 %v541, 536870912
    %v543 = vshrl.u32 %v542, 30
    %v544 = vshll.u32 %v543, 30
    %v545 = vsub.s32 %v541, %v544
    %vm546 = vcmp.lt.s32.totalorder %v545, 0
    %v547 = vsub.s32 0, %v545
    %v548 = vsel %vm546, %v547, %v545
    %v549 = vclz %v548
    %v550 = vsub.s32 %v549, 2
    %vm551 = vcmp.gt.s32.totalorder 0, %v550
    %v552 = vsel %vm551, 0, %v550
    %v553 = vsub.s32 32, %v552
    %v554 = vshll.u32 %v545, %v552
    %v555 = vshrl.u32 %v537, %v553
    %v556 = vor.u32 %v554, %v555
    %v557 = vsub.s32 4294967266, %v552
    %v558 = vadd.s32 %v557, 127
    %v559 = vshll.u32 %v558, 23
    %v560 = vor.u32 4788187, %v559
    %v561 = vand.u32 2147483647, %v560
    %v563 = vcvt.s32.f32 %v556
    %v564 = vmul.f32 %v563, %v561
    %v565 = vxor.u32 %v564, 2147483648
    %v566 = vsel %vm445, %v565, %v564
    %v567 = vsub.s32 4, %v543
    %v568 = vsel %vm445, %v567, %v543
    %v569 = vsel %vm444, %v131, %v566
    %v570 = vsel %vm444, 0, %v568
    %v571 = vmul.f32 %v569, %v569
    %v572 = vmul.f32 %v571, -0.001358992
    %v573 = vadd.f32 %v572, 0.041655596
    %v574 = vmul.f32 %v571, %v573
    %v575 = vadd.f32 %v574, -0.4999988
    %v576 = vmul.f32 %v571, %v575
    %v577 = vadd.f32 1.0, %v576
    %v578 = vmul.f32 %v569, %v569
    %v579 = vmul.f32 %v578, -0.00019511016
    %v580 = vadd.f32 %v579, 0.008332121
    %v581 = vmul.f32 %v578, %v580
    %v582 = vadd.f32 %v581, -0.16666654
    %v583 = vmul.f32 %v578, %v582
    %v584 = vadd.f32 %v583, 1.0
    %v585 = vmul.f32 %v584, %v569
    %vm586 = vweird.f32 %v131
    %v587 = vadd.s32 %v570, 3
    %v588 = vand.u32 %v587, 3
    %vm589 = vcmp.lt.s32.totalorder %v588, 2
    %vm590 = vcmp.eq.s32.totalorder %v588, 0
    %v591 = vxor.u32 %v585, 2147483648
    %v592 = vsel %vm590, %v577, %v591
    %vm593 = vcmp.eq.s32.totalorder %v588, 2
    %v594 = vxor.u32 %v577, 2147483648
    %v595 = vsel %vm593, %v594, %v585
    %v596 = vsel %vm589, %v592, %v595
    %v597 = vsel %vm586, nan, %v596
    %v598 = vand.u32 2147483647, %v132
    %vm599 = vcmp.le.f32.partialorder %v598, 0.7853982
    %vm600 = vcmp.lt.s32.totalorder %v132, 0
    %v601 = vand.u32 %v132, 2139095040
    %v602 = vshrl.u32 %v601, 23
    %v603 = vsub.s32 %v602, 127
    %v604 = vand.u32 2147483647, %v132
    %v605 = vand.u32 %v604, 8388607
    %v606 = vor.u32 %v605, 8388608
    %v607 = vsub.s32 0, %v606
    %v608 = vadd.s32 %v603, 1
    %vm609 = vcmp.gt.s32.totalorder %v608, 0
    %v610 = vsel %vm609, %v608, 0
    %v611 = vshrl.u32 %v610, 5
    %v612 = vand.u32 %v610, 31
    %v613 = vsub.s32 32, %v612
    %v614 = vshrl.u32 683565275, %v613
    %v615 = vshll.u32 683565275, %v612
    %v616 = vshrl.u32 2475754826, %v613
    %v617 = vor.u32 %v615, %v616
    %v618 = vshll.u32 2475754826, %v612
    %v619 = vshrl.u32 2131351028, %v613
    %v620 = vor.u32 %v618, %v619
    %v621 = vshll.u32 2131351028, %v612
    %v622 = vshrl.u32 2102212464, %v613
    %v623 = vor.u32 %v621, %v622
    %v624 = vshll.u32 2102212464, %v612
    %v625 = vshrl.u32 920167782, %v613
    %v626 = vor.u32 %v624, %v625
    %v627 = vshll.u32 920167782, %v612
    %v628 = vshrl.u32 1326507024, %v613
    %v629 = vor.u32 %v627, %v628
    %vm630 = vcmp.lt.s32.totalorder %v611, 1
    %vm631 = vcmp.lt.s32.totalorder %v611, 2
    %vm632 = vcmp.lt.s32.totalorder %v611, 3
    %vm633 = vcmp.lt.s32.totalorder %v611, 4
    %v634 = vsel %vm630, %v614, %v617
    %v635 = vsel %vm633, %v623, 2102212464
    %v636 = vsel %vm632, %v620, %v635
    %v637 = vsel %vm631, %v634, %v636
    %v638 = vsel %vm630, %v617, %v620
    %v639 = vsel %vm633, %v626, 920167782
    %v640 = vsel %vm632, %v623, %v639
    %v641 = vsel %vm631, %v638, %v640
    %v642 = vsel %vm630, %v620, %v623
    %v643 = vsel %vm633, %v629, 1326507024
    %v644 = vsel %vm632, %v626, %v643
    %v645 = vsel %vm631, %v642, %v644
    %v646 = vshll.u32 %v606, 8
    %v647 = vand.u32 %v646, 65535
    %v648 = vshrl.u32 %v646, 16
    %v649 = vand.u32 %v645, 65535
    %v650 = vshrl.u32 %v645, 16
    %v651 = vmul.u32 %v647, %v649
    %v652 = vmul.u32 %v647, %v650
    %v653 = vmul.u32 %v648, %v649
    %v654 = vmul.u32 %v648, %v650
    %v655 = vshll.u32 %v652, 16
    %v656 = vshrl.u32 %v652, 16
    %v657 = vshll.u32 %v653, 16
    %v658 = vshrl.u32 %v653, 16
    %vm659 = vc.u32 %v651, %v655
    %v660 = vsel %vm659, 1, 0
    %v661 = vadd.s32 %v651, %v655
    %v662 = vadd.s32 %v654, %v660
    %vm663 = vc.u32 %v661, %v657
    %v664 = vsel %vm663, 1, 0
    %v665 = vadd.s32 %v661, %v657
    %v666 = vadd.s32 %v662, %v664
    %v667 = vadd.s32 %v666, %v656
    %v668 = vadd.s32 %v667, %v658
    %v669 = vand.u32 %v646, 65535
    %v670 = vshrl.u32 %v646, 16
    %v671 = vand.u32 %v641, 65535
    %v672 = vshrl.u32 %v641, 16
    %v673 = vmul.u32 %v669, %v671
    %v674 = vmul.u32 %v669, %v672
    %v675 = vmul.u32 %v670, %v671
    %v676 = vmul.u32 %v670, %v672
    %v677 = vshll.u32 %v674, 16
    %v678 = vshrl.u32 %v674, 16
    %v679 = vshll.u32 %v675, 16
    %v680 = vshrl.u32 %v675, 16
    %vm681 = vc.u32 %v673, %v677
    %v682 = vsel %vm681, 1, 0
    %v683 = vadd.s32 %v673, %v677
    %v684 = vadd.s32 %v676, %v682
    %vm685 = vc.u32 %v683, %v679
    %v686 = vsel %vm685, 1, 0
    %v687 = vadd.s32 %v683, %v679
    %v688 = vadd.s32 %v684, %v686
    %v689 = vadd.s32 %v688, %v678
    %v690 = vadd.s32 %v689, %v680
    %v691 = vmul.u32 %v646, %v637
    %v692 = vadd.s32 %v668, %v687
    %vm693 = vc.u32 %v668, %v687
    %v694 = vadd.s32 %v690, 1
    %v695 = vsel %vm693, %v694, %v690
    %v696 = vadd.s32 %v691, %v695
    %v697 = vadd.s32 %v696, 536870912
    %v698 = vshrl.u32 %v697, 30
    %v699 = vshll.u32 %v698, 30
    %v700 = vsub.s32 %v696, %v699
    %vm701 = vcmp.lt.s32.totalorder %v700, 0
    %v702 = vsub.s32 0, %v700
    %v703 = vsel %vm701, %v702, %v700
    %v704 = vclz %v703
    %v705 = vsub.s32 %v704, 2
    %vm706 = vcmp.gt.s32.totalorder 0, %v705
    %v707 = vsel %vm706, 0, %v705
    %v708 = vsub.s32 32, %v707
    %v709 = vshll.u32 %v700, %v707
    %v710 = vshrl.u32 %v692, %v708
    %v711 = vor.u32 %v709, %v710
    %v712 = vsub.s32 4294967266, %v707
    %v713 = vadd.s32 %v712, 127
    %v714 = vshll.u32 %v713, 23
    %v715 = vor.u32 4788187, %v714
    %v716 = vand.u32 2147483647, %v715
    %v718 = vcvt.s32.f32 %v711
    %v719 = vmul.f32 %v718, %v716
    %v720 = vxor.u32 %v719, 2147483648
    %v721 = vsel %vm600, %v720, %v719
    %v722 = vsub.s32 4, %v698
    %v723 = vsel %vm600, %v722, %v698
    %v724 = vsel %vm599, %v132, %v721
    %v725 = vsel %vm599, 0, %v723
    %v726 = vmul.f32 %v724, %v724
    %v727 = vmul.f32 %v726, -0.001358992
    %v728 = vadd.f32 %v727, 0.041655596
    %v729 = vmul.f32 %v726, %v728
    %v730 = vadd.f32 %v729, -0.4999988
    %v731 = vmul.f32 %v726, %v730
    %v732 = vadd.f32 1.0, %v731
    %v733 = vmul.f32 %v724, %v724
    %v734 = vmul.f32 %v733, -0.00019511016
    %v735 = vadd.f32 %v734, 0.008332121
    %v736 = vmul.f32 %v733, %v735
    %v737 = vadd.f32 %v736, -0.16666654
    %v738 = vmul.f32 %v733, %v737
    %v739 = vadd.f32 %v738, 1.0
    %v740 = vmul.f32 %v739, %v724
    %vm741 = vweird.f32 %v132
    %v742 = vadd.s32 %v725, 3
    %v743 = vand.u32 %v742, 3
    %vm744 = vcmp.lt.s32.totalorder %v743, 2
    %vm745 = vcmp.eq.s32.totalorder %v743, 0
    %v746 = vxor.u32 %v740, 2147483648
    %v747 = vsel %vm745, %v732, %v746
    %vm748 = vcmp.eq.s32.totalorder %v743, 2
    %v749 = vxor.u32 %v732, 2147483648
    %v750 = vsel %vm748, %v749, %v740
    %v751 = vsel %vm744, %v747, %v750
    %v752 = vsel %vm741, nan, %v751
    %v753 = vmul.f32 %v118, %v597
    %v754 = vmul.f32 %v130, %v752
    %v755 = vld [vmem:[#allocation4] sm:$0xff]
    %v756 = vld [vmem:[#allocation4 + $0x8] sm:$0xff]
    %v757 = vmul.f32 %v441, 0.05
    %v758 = vmul.f32 %v442, 0.05
    %v759 = vadd.f32 %v757, 0.0
    %v760 = vadd.f32 %v758, 0.0
    %v761 = vadd.f32 %v755, %v759
    %v762 = vadd.f32 %v756, %v760
    %v763 = vld [vmem:[#allocation4 + $0x10] sm:$0xff]
    %v764 = vld [vmem:[#allocation4 + $0x18] sm:$0xff]
    %v765 = vmul.f32 %v753, 0.05
    %v766 = vmul.f32 %v754, 0.05
    %v767 = vadd.f32 %v765, 0.0
    %v768 = vadd.f32 %v766, 0.0
    %v769 = vadd.f32 %v763, %v767
    %v770 = vadd.f32 %v764, %v768
    %v771 = vmax.f32 %v761, -1.0
    %v772 = vmax.f32 %v762, -1.0
    %v773 = vmin.f32 %v771, 1.0
    %v774 = vmin.f32 %v772, 1.0
    %775 = vst [vmem:[#allocation7] sm:$0xff] %v773
    %776 = vst [vmem:[#allocation7 + $0x8] sm:$0xff] %v774
    %v777 = vmax.f32 %v769, -1.0
    %v778 = vmax.f32 %v770, -1.0
    %v779 = vmin.f32 %v777, 1.0
    %v780 = vmin.f32 %v778, 1.0
    %781 = vst [vmem:[#allocation7 + $0x10] sm:$0xff] %v779
    %782 = vst [vmem:[#allocation7 + $0x18] sm:$0xff] %v780
    // Predicated region
    $region10: #{tpu_custom_call.1} parent=1 // pred_check
      _
    $region11: #{tpu_custom_call.1} parent=1 // pred_check_branch
      %784 = sbr.rel (0) target = $region13
    $region12: #{tpu_custom_call.1} parent=1 // pred_region
      %786 = vsyncadd [#allocation6], 0
      %s788 = sshll.u32 [#allocation7], 4
      %s789 = int_to_ptr.vmem [resolvable:$true] %s788
      %s790 = sshll.u32 %s2, 4
      %s791 = int_to_ptr.hbm [resolvable:$true] %s790
      %793 = dma.vmem_to_hbm [thread:$0]  %s789, 512, %s791, [#allocation6]
    $region13: #{tpu_custom_call.1} parent=1 // pred_fallthru
      _
    // Predicated region
    $region14: #{tpu_custom_call.1} parent=1 // pred_check
      _
    $region15: #{tpu_custom_call.1} parent=1 // pred_check_branch
      %795 = sbr.rel (0) target = $region17
    $region16: #{tpu_custom_call.1} parent=1 // pred_region
      %797 = dma.done [#allocation6], 512
    $region17: #{tpu_custom_call.1} parent=1 // pred_fallthru
      _
    %798 = vsyncpa [#allocation5], 1
    %799 = vsyncpa [#allocation6], 1

</llo_original>
